<compile_context>
chip_gen: v6e
topology: v6e:2x2x1
jax: 0.10.0
libtpu: 0.0.40
codegen_flags: <defaults>
</compile_context>

<pallas_src>
import jax
import jax.numpy as jnp
from jax.experimental import pallas as pl
from jax.experimental.pallas import tpu as pltpu


def _passthrough_kernel(ref_ref, out_ref):
    # Straight VMEM tile copy (memory-bound identity; no compute).
    out_ref[...] = ref_ref[...]


def no_attention_layer(query_features, reference_features):
    """Forward of NoAttentionLayer: returns reference_features unchanged."""
    del query_features  # the module ignores the query features entirely
    x = reference_features
    orig_shape = x.shape
    orig_dtype = x.dtype

    # Flatten to 2-D (rows, lanes): innermost axis stays last (lane-dense),
    # all leading axes collapse into the sublane/row axis.
    lanes = orig_shape[-1]
    rows = x.size // lanes
    x2 = x.reshape(rows, lanes)

    # Row tile: full extent when small, else a 512-row stripe (multiple of 8;
    # edge blocks are masked automatically).
    TM = rows if rows <= 512 else 512
    # Lane tile: full extent unless large and 128-divisible, in which case tile
    # to keep the double-buffered VMEM footprint small (max tile = 2 MiB f32).
    if lanes > 1024 and lanes % 128 == 0:
        TN = 1024
    else:
        TN = lanes

    grid = (pl.cdiv(rows, TM), pl.cdiv(lanes, TN))

    out2 = pl.pallas_call(
        _passthrough_kernel,
        out_shape=jax.ShapeDtypeStruct((rows, lanes), orig_dtype),
        grid_spec=pltpu.PrefetchScalarGridSpec(
            num_scalar_prefetch=0,
            grid=grid,
            in_specs=[pl.BlockSpec((TM, TN), lambda i, j: (i, j))],
            out_specs=pl.BlockSpec((TM, TN), lambda i, j: (i, j)),
        ),
        compiler_params=pltpu.CompilerParams(
            dimension_semantics=("parallel", "parallel"),
            vmem_limit_bytes=32 * 1024 * 1024,  # explicit headroom on all gens
        ),
    )(x2)

    # TODO(synk): the truly zero-cost forward is returning the input array
    # itself (pure alias, no kernel); the copy kernel is kept so a Pallas call
    # is actually exercised.
    return out2.reshape(orig_shape)


def no_attention_layer_ref(query_features, reference_features):
    """Pure-JAX reference mirroring the PyTorch forward."""
    return reference_features


if __name__ == "__main__":
    key = jax.random.PRNGKey(0)
    k1, k2 = jax.random.split(key)
    N, C, H, W = 2, 4, 16, 16
    query_features = jax.random.normal(k1, (N, C, H, W), dtype=jnp.float32)
    reference_features = jax.random.normal(k2, (N, C, H, W), dtype=jnp.float32)

    out = jax.block_until_ready(
        no_attention_layer(query_features, reference_features))
    ref = jax.block_until_ready(
        no_attention_layer_ref(query_features, reference_features))

    assert out.shape == reference_features.shape, out.shape
    assert out.dtype == reference_features.dtype, out.dtype
    assert jnp.array_equal(out, ref), "mismatch vs reference"
    print("KERNEL_OK")
</pallas_src>

<mosaic_0001>
module attributes {stable_mosaic.version = 11 : i64} {
  func.func @_passthrough_kernel(%arg0: i32, %arg1: i32, %arg2: memref<128x16xf32, #tpu.memory_space<vmem>>, %arg3: memref<128x16xf32, #tpu.memory_space<vmem>>) attributes {dimension_semantics = [#tpu.dimension_semantics<parallel>, #tpu.dimension_semantics<parallel>], iteration_bounds = array<i64: 1, 1>, scalar_prefetch = 0 : i64, scratch_operands = 0 : i64, tpu.core_type = #tpu.core_type<tc>, window_params = [{transform_indices = @transform_0, window_bounds = array<i64: 128, 16>}, {transform_indices = @transform_1, window_bounds = array<i64: 128, 16>}]} {
    %c0 = arith.constant 0 : index
    %c0_0 = arith.constant 0 : index
    %0 = vector.load %arg2[%c0, %c0_0] : memref<128x16xf32, #tpu.memory_space<vmem>>, vector<128x16xf32>
    %c0_1 = arith.constant 0 : index
    %c0_2 = arith.constant 0 : index
    %1 = vector.load %arg3[%c0_1, %c0_2] : memref<128x16xf32, #tpu.memory_space<vmem>>, vector<128x16xf32>
    tpu.vector_store %arg3[%c0_1, %c0_2], %0 {strides = array<i32>} : memref<128x16xf32, #tpu.memory_space<vmem>>, vector<128x16xf32>,
    return
  }
  func.func @transform_0(%arg0: i32, %arg1: i32) -> (i32, i32) {
    %c0_i32 = arith.constant 0 : i32
    return %arg0, %arg1 : i32, i32
  }
  func.func @transform_1(%arg0: i32, %arg1: i32) -> (i32, i32) {
    %c0_i32 = arith.constant 0 : i32
    return %arg0, %arg1 : i32, i32
  }
}

</mosaic_0001>

<llo_original>
// kernel: tpu_custom_call.1
$region0: #{tpu_custom_call.1}
  #allocation0 [shape = 'u32[]', space=smem, size = 0x4, offset = 0x4, fixed_abs, tag = 'smem constant byte address 0x4 - core index']
  #allocation1 [shape = 'u32[144,128]{1,0:T(1,128)}', space=vmem, size = 0x12000, scoped, tag = 'internal scratch']
  %s0 = inlined_call_operand.vmem [shape: f32[128,16], index: 0, kind: input, shape index: {}]
  %s1 = inlined_call_operand.vmem [shape: f32[128,16], index: 1, kind: output, shape index: {}]
  %s2 = sld [smem:[#allocation0]]
  $region14: #{tpu_custom_call.1} parent=0
    _
  %s4 = ssub.s32 1, %s2
  %s5 = scalar_select 0, %s4, %s2
  // Predicated region
  $region2: #{tpu_custom_call.1} parent=0 // pred_check
    _
  $region3: #{tpu_custom_call.1} parent=0 // pred_check_branch
    %7 = sbr.rel (0) target = $region5
  $region4: #{tpu_custom_call.1} parent=0 // pred_region
    _
  $region5: #{tpu_custom_call.1} parent=0 // pred_fallthru
    _
  %v8 = vld [vmem:[%s0] sm:$0xff]
  %v9 = vld [vmem:[%s0 + $0x8] sm:$0xff]
  %v10 = vld [vmem:[%s0 + $0x10] sm:$0xff]
  %v11 = vld [vmem:[%s0 + $0x18] sm:$0xff]
  %v12 = vld [vmem:[%s0 + $0x20] sm:$0xff]
  %v13 = vld [vmem:[%s0 + $0x28] sm:$0xff]
  %v14 = vld [vmem:[%s0 + $0x30] sm:$0xff]
  %v15 = vld [vmem:[%s0 + $0x38] sm:$0xff]
  %v16 = vld [vmem:[%s0 + $0x40] sm:$0xff]
  %v17 = vld [vmem:[%s0 + $0x48] sm:$0xff]
  %v18 = vld [vmem:[%s0 + $0x50] sm:$0xff]
  %v19 = vld [vmem:[%s0 + $0x58] sm:$0xff]
  %v20 = vld [vmem:[%s0 + $0x60] sm:$0xff]
  %v21 = vld [vmem:[%s0 + $0x68] sm:$0xff]
  %v22 = vld [vmem:[%s0 + $0x70] sm:$0xff]
  %v23 = vld [vmem:[%s0 + $0x78] sm:$0xff]
  %vm24 = vcmask 130048
  %25 = vst.msk [vmem:[%s1] sm:$0xff] %vm24, %v8
  %26 = vst.msk [vmem:[%s1 + $0x8] sm:$0xff] %vm24, %v9
  %27 = vst.msk [vmem:[%s1 + $0x10] sm:$0xff] %vm24, %v10
  %28 = vst.msk [vmem:[%s1 + $0x18] sm:$0xff] %vm24, %v11
  %29 = vst.msk [vmem:[%s1 + $0x20] sm:$0xff] %vm24, %v12
  %30 = vst.msk [vmem:[%s1 + $0x28] sm:$0xff] %vm24, %v13
  %31 = vst.msk [vmem:[%s1 + $0x30] sm:$0xff] %vm24, %v14
  %32 = vst.msk [vmem:[%s1 + $0x38] sm:$0xff] %vm24, %v15
  %33 = vst.msk [vmem:[%s1 + $0x40] sm:$0xff] %vm24, %v16
  %34 = vst.msk [vmem:[%s1 + $0x48] sm:$0xff] %vm24, %v17
  %35 = vst.msk [vmem:[%s1 + $0x50] sm:$0xff] %vm24, %v18
  %36 = vst.msk [vmem:[%s1 + $0x58] sm:$0xff] %vm24, %v19
  %37 = vst.msk [vmem:[%s1 + $0x60] sm:$0xff] %vm24, %v20
  %38 = vst.msk [vmem:[%s1 + $0x68] sm:$0xff] %vm24, %v21
  %39 = vst.msk [vmem:[%s1 + $0x70] sm:$0xff] %vm24, %v22
  %40 = vst.msk [vmem:[%s1 + $0x78] sm:$0xff] %vm24, %v23
  // Predicated region
  $region6: #{tpu_custom_call.1} parent=0 // pred_check
    _
  $region7: #{tpu_custom_call.1} parent=0 // pred_check_branch
    %42 = sbr.rel (0) target = $region9
  $region8: #{tpu_custom_call.1} parent=0 // pred_region
    _
  $region9: #{tpu_custom_call.1} parent=0 // pred_fallthru
    _
  // Predicated region
  $region10: #{tpu_custom_call.1} parent=0 // pred_check
    _
  $region11: #{tpu_custom_call.1} parent=0 // pred_check_branch
    %44 = sbr.rel (0) target = $region13
  $region12: #{tpu_custom_call.1} parent=0 // pred_region
    _
  $region13: #{tpu_custom_call.1} parent=0 // pred_fallthru
    _

</llo_original>
